<compile_context>
chip_gen: v7x
topology: tpu7x:2x2x1
jax: 0.10.0
libtpu: 0.0.40
codegen_flags: <defaults>
</compile_context>

<pallas_src>
import functools

import jax
import jax.numpy as jnp
from jax.experimental import pallas as pl
from jax.experimental.pallas import tpu as pltpu

_HIDDEN = 1024    # fc output width (module constant)
_HEAD_PAD = 128   # padded lane width of the fused [mu | sigma | zeros] slab


def _softplus(x):
    # numerically stable softplus matching F.softplus semantics (f32)
    return jnp.maximum(x, 0.0) + jnp.log1p(jnp.exp(-jnp.abs(x)))


def inverse_model_kernel(n_actions, x_ref, wfc_ref, wh_ref, bias_ref, out_ref):
    # features arrive f32; bf16 cast happens here (free VPU op, no wrapper op)
    x = x_ref[...].astype(jnp.bfloat16)                               # (M, 2H)

    # combined bias slab: [fc bias (1024) | head biases padded to 128]
    b_fc = bias_ref[:, :_HIDDEN]                                      # (1, 1024)
    b_heads = bias_ref[:, _HIDDEN:]                                   # (1, 128)

    # fc layer: (M, 2H) bf16 @ (2H, 1024) bf16 -> (M, 1024), f32 accumulation
    hidden = jnp.dot(x, wfc_ref[...],
                     preferred_element_type=jnp.float32) + b_fc

    # fused mu/sigma heads: weights pre-stored (1024, 128) (in, out), zero-padded
    # beyond 2A -> plain matmul, no transpose, lane-dense 128-wide result.
    heads = jnp.dot(hidden.astype(jnp.bfloat16), wh_ref[...],
                    preferred_element_type=jnp.float32) + b_heads     # (M, 128)

    # elementwise tail in f32 on the whole 128-lane slab (EUP/VPU filler work);
    # lanes < A get the mu activation, the rest get the sigma activation
    # (padded lanes produce garbage that the wrapper slices away).
    mu_part = 2.0 * jnp.tanh(heads)
    sigma_part = _softplus(heads) + 0.001
    lane = jax.lax.broadcasted_iota(jnp.int32, heads.shape, 1)
    out_ref[...] = jnp.where(lane < n_actions, mu_part, sigma_part)


def _run(x, wfc, w_heads, bias_cat, n_actions):
    """x: (M, 2H) f32 -> (mu, sigma) each (M, n_actions) f32."""
    m, in_dim = x.shape
    cost = pl.CostEstimate(
        flops=2 * m * (in_dim * _HIDDEN + _HIDDEN * _HEAD_PAD),
        transcendentals=3 * m * _HEAD_PAD,          # tanh + exp + log1p lanes
        bytes_accessed=(x.size * 4 + wfc.size * 2 + w_heads.size * 2
                        + bias_cat.size * 4 + m * _HEAD_PAD * 4),
    )
    vmem = pl.BlockSpec(memory_space=pltpu.MemorySpace.VMEM)
    out = pl.pallas_call(
        functools.partial(inverse_model_kernel, n_actions),
        out_shape=jax.ShapeDtypeStruct((m, _HEAD_PAD), jnp.float32),
        in_specs=[vmem] * 4,
        out_specs=vmem,
        cost_estimate=cost,
    )(x, wfc, w_heads, bias_cat)
    mu = out[:, :n_actions]
    sigma = out[:, n_actions:2 * n_actions]
    return mu, sigma


def inverse_model_forward(features, params):
    """Module-faithful forward: features.view(1, -1) -> (mu, sigma), each (1, A)."""
    wfc, w_heads, bias_cat, n_actions = params
    x = features.reshape(1, -1).astype(jnp.float32)
    return _run(x, wfc, w_heads, bias_cat, n_actions)


def inverse_model_forward_batched(features_batch, params):
    """(B, 2H) features: same math, amortizes weight DMA + launch over B rows."""
    wfc, w_heads, bias_cat, n_actions = params
    x = features_batch.reshape(features_batch.shape[0], -1).astype(jnp.float32)
    return _run(x, wfc, w_heads, bias_cat, n_actions)


def make_params(key, n_actions, hidden_dims):
    """Deterministic synthetic init.

    mu / sigma heads follow set_init (weight ~ N(0, 0.1), bias = 0); the fc
    layer uses the same weight scheme with a nonzero uniform bias so the
    folded-bias path is exercised.

    Layouts (kernel-native):
      wfc      : (2H, 1024)  bf16  -- pre-transposed (in, out) so kernel does x @ W
      w_heads  : (1024, 128) bf16  -- cols [0:A)=mu, [A:2A)=sigma, rest zero
      bias_cat : (1, 1152)   f32   -- [fc bias (1024) | head biases padded to 128]
    """
    k_fc, k_bfc, k_mu, k_sig = jax.random.split(key, 4)
    in_dim = hidden_dims * 2

    wfc = (0.1 * jax.random.normal(k_fc, (in_dim, _HIDDEN), jnp.float32)
           ).astype(jnp.bfloat16)
    bound = 1.0 / float(jnp.sqrt(jnp.float32(in_dim)))
    bfc = jax.random.uniform(k_bfc, (_HIDDEN,), jnp.float32, -bound, bound)

    wmu = 0.1 * jax.random.normal(k_mu, (_HIDDEN, n_actions), jnp.float32)
    wsig = 0.1 * jax.random.normal(k_sig, (_HIDDEN, n_actions), jnp.float32)
    w_heads = jnp.zeros((_HIDDEN, _HEAD_PAD), jnp.float32)
    w_heads = w_heads.at[:, :n_actions].set(wmu)
    w_heads = w_heads.at[:, n_actions:2 * n_actions].set(wsig)
    w_heads = w_heads.astype(jnp.bfloat16)

    b_heads_pad = jnp.zeros((_HEAD_PAD,), jnp.float32)       # set_init: biases = 0
    bias_cat = jnp.concatenate([bfc, b_heads_pad]).reshape(1, _HIDDEN + _HEAD_PAD)
    return wfc, w_heads, bias_cat, n_actions


def reference_forward(features, params):
    """Pure-JAX reference mirroring the kernel's numerics (bf16 weights/x,
    f32 accumulation + f32 bias, bf16 re-cast of hidden before the heads)."""
    wfc, w_heads, bias_cat, a = params
    x = features.reshape(1, -1).astype(jnp.bfloat16).astype(jnp.float32)
    hidden = x @ wfc.astype(jnp.float32) + bias_cat[:, :_HIDDEN]
    hidden = hidden.astype(jnp.bfloat16).astype(jnp.float32)
    heads = hidden @ w_heads.astype(jnp.float32) + bias_cat[:, _HIDDEN:]
    mu = 2.0 * jnp.tanh(heads[:, :a])
    sigma = _softplus(heads[:, a:2 * a]) + 0.001
    return mu, sigma


if __name__ == "__main__":
    n_actions = 8
    hidden_dims = 32

    key = jax.random.PRNGKey(0)
    k_param, k_feat = jax.random.split(key)
    params = make_params(k_param, n_actions, hidden_dims)
    features = jax.random.normal(k_feat, (hidden_dims * 2,), dtype=jnp.float32)

    # --- module-faithful single-sample path -------------------------------
    mu, sigma = inverse_model_forward(features, params)
    jax.block_until_ready((mu, sigma))

    mu_ref, sigma_ref = reference_forward(features, params)
    assert mu.shape == (1, n_actions) and sigma.shape == (1, n_actions)
    # bf16 weights -> relaxed tolerance vs the f32-math reference
    assert jnp.allclose(mu, mu_ref, atol=2e-2, rtol=2e-2)
    assert jnp.allclose(sigma, sigma_ref, atol=2e-2, rtol=2e-2)
    assert bool(jnp.all(sigma > 0.0))

    # --- batched path (amortizes weight DMA / launch overhead) ------------
    feats_b = jax.random.normal(jax.random.PRNGKey(1),
                                (4, hidden_dims * 2), dtype=jnp.float32)
    mu_b, sigma_b = inverse_model_forward_batched(feats_b, params)
    jax.block_until_ready((mu_b, sigma_b))
    assert mu_b.shape == (4, n_actions) and sigma_b.shape == (4, n_actions)
    for i in range(feats_b.shape[0]):
        mri, sri = reference_forward(feats_b[i], params)
        assert jnp.allclose(mu_b[i:i + 1], mri, atol=2e-2, rtol=2e-2)
        assert jnp.allclose(sigma_b[i:i + 1], sri, atol=2e-2, rtol=2e-2)
    assert bool(jnp.all(sigma_b > 0.0))

    print("KERNEL_OK")
</pallas_src>

<mosaic_0001>
module attributes {stable_mosaic.version = 11 : i64} {
  func.func @inverse_model_kernel(%arg0: memref<1x64xf32, #tpu.memory_space<vmem>>, %arg1: memref<64x1024xbf16, #tpu.memory_space<vmem>>, %arg2: memref<1024x128xbf16, #tpu.memory_space<vmem>>, %arg3: memref<1x1152xf32, #tpu.memory_space<vmem>>, %arg4: memref<1x128xf32, #tpu.memory_space<vmem>>) attributes {dimension_semantics = [], scalar_prefetch = 0 : i64, scratch_operands = 0 : i64, tpu.core_type = #tpu.core_type<tc>} {
    %c0 = arith.constant 0 : index
    %c0_0 = arith.constant 0 : index
    %0 = vector.load %arg0[%c0, %c0_0] : memref<1x64xf32, #tpu.memory_space<vmem>>, vector<1x64xf32>
    %1 = arith.truncf %0 : vector<1x64xf32> to vector<1x64xbf16>
    %c0_1 = arith.constant 0 : index
    %c0_2 = arith.constant 0 : index
    %2 = vector.load %arg3[%c0_1, %c0_2] : memref<1x1152xf32, #tpu.memory_space<vmem>>, vector<1x1024xf32>
    %c0_3 = arith.constant 0 : index
    %c1024 = arith.constant 1024 : index
    %3 = vector.load %arg3[%c0_3, %c1024] : memref<1x1152xf32, #tpu.memory_space<vmem>>, vector<1x128xf32>
    %c0_4 = arith.constant 0 : index
    %c0_5 = arith.constant 0 : index
    %4 = vector.load %arg1[%c0_4, %c0_5] : memref<64x1024xbf16, #tpu.memory_space<vmem>>, vector<64x1024xbf16>
    %cst = arith.constant dense<0.000000e+00> : vector<1x1024xf32>
    %5 = tpu.matmul %1, %4, %cst {dimension_numbers = #tpu.dot_dimension_numbers<[1], [0], [0], [1], [0, 0, 1, 1], [], []>} : vector<1x64xbf16>, vector<64x1024xbf16>, vector<1x1024xf32> -> vector<1x1024xf32>
    %6 = arith.addf %5, %2 : vector<1x1024xf32>
    %7 = arith.truncf %6 : vector<1x1024xf32> to vector<1x1024xbf16>
    %c0_6 = arith.constant 0 : index
    %c0_7 = arith.constant 0 : index
    %8 = vector.load %arg2[%c0_6, %c0_7] : memref<1024x128xbf16, #tpu.memory_space<vmem>>, vector<1024x128xbf16>
    %cst_8 = arith.constant dense<0.000000e+00> : vector<1x128xf32>
    %9 = tpu.matmul %7, %8, %cst_8 {dimension_numbers = #tpu.dot_dimension_numbers<[1], [0], [0], [1], [0, 0, 1, 1], [], []>} : vector<1x1024xbf16>, vector<1024x128xbf16>, vector<1x128xf32> -> vector<1x128xf32>
    %10 = arith.addf %9, %3 : vector<1x128xf32>
    %11 = math.tanh %10 : vector<1x128xf32>
    %cst_9 = arith.constant 2.000000e+00 : f32
    %12 = vector.broadcast %cst_9 : f32 to vector<1x128xf32>
    %13 = arith.mulf %12, %11 : vector<1x128xf32>
    %cst_10 = arith.constant 0.000000e+00 : f32
    %14 = vector.broadcast %cst_10 : f32 to vector<1x128xf32>
    %15 = arith.maximumf %10, %14 : vector<1x128xf32>
    %16 = math.absf %10 : vector<1x128xf32>
    %cst_11 = arith.constant 0.000000e+00 : f32
    %17 = vector.broadcast %cst_11 : f32 to vector<1x128xf32>
    %18 = arith.subf %17, %16 : vector<1x128xf32>
    %19 = math.exp %18 : vector<1x128xf32>
    %20 = math.log1p %19 : vector<1x128xf32>
    %21 = arith.addf %15, %20 : vector<1x128xf32>
    %cst_12 = arith.constant 1.000000e-03 : f32
    %22 = vector.broadcast %cst_12 : f32 to vector<1x128xf32>
    %23 = arith.addf %21, %22 : vector<1x128xf32>
    %24 = tpu.iota {dimensions = array<i32: 1>} : vector<1x128xi32>
    %c8_i32 = arith.constant 8 : i32
    %25 = vector.broadcast %c8_i32 : i32 to vector<1x128xi32>
    %26 = arith.cmpi slt, %24, %25 : vector<1x128xi32>
    %27 = arith.select %26, %13, %23 : vector<1x128xi1>, vector<1x128xf32>
    %c0_13 = arith.constant 0 : index
    %c0_14 = arith.constant 0 : index
    %28 = vector.load %arg4[%c0_13, %c0_14] : memref<1x128xf32, #tpu.memory_space<vmem>>, vector<1x128xf32>
    tpu.vector_store %arg4[%c0_13, %c0_14], %27 {strides = array<i32>} : memref<1x128xf32, #tpu.memory_space<vmem>>, vector<1x128xf32>,
    return
  }
}

</mosaic_0001>

<llo_original>
// kernel: tpu_custom_call.1
$region0: #{tpu_custom_call.1}
  #allocation0 [shape = 'u32[]', space=smem, size = 0x4, offset = 0x4, fixed_abs, tag = 'smem constant byte address 0x4 - core index']
  #allocation1 [shape = 'u32[144,128]{1,0:T(1,128)}', space=vmem, size = 0x12000, scoped, tag = 'internal scratch']
  %s0 = inlined_call_operand.hbm [shape: f32[1,64], index: 0, kind: input, shape index: {}]
  %s1 = inlined_call_operand.hbm [shape: bf16[64,1024], index: 1, kind: input, shape index: {}]
  %s2 = inlined_call_operand.hbm [shape: bf16[1024,128], index: 2, kind: input, shape index: {}]
  %s3 = inlined_call_operand.vmem [shape: f32[1,1152], index: 3, kind: input, shape index: {}]
  %s4 = inlined_call_operand.hbm [shape: f32[1,128], index: 4, kind: output, shape index: {}]
  %s5 = sld [smem:[#allocation0]]
  $region38: #{tpu_custom_call.1} parent=0
    _
  %s7 = ssub.s32 1, %s5
  %s8 = scalar_select 0, %s7, %s5
  $region1: #{tpu_custom_call.1} parent=0
    #allocation2 [shape = 'u8[512]{0}', space=vmem, size = 0x400, scoped, tag = 'input window, operand 0, single buffered']
    #allocation3 [shape = 's32[1]{0}', space=sflag, size = 0x4, scoped, tag = 'scoped memory for tpu_custom_call.1']
    #allocation4 [shape = 's32[1]{0}', space=sflag, size = 0x4, scoped, tag = 'scoped memory for tpu_custom_call.1']
    #allocation5 [shape = 'u8[131072]{0}', space=vmem, size = 0x20000, scoped, tag = 'input window, operand 1, single buffered']
    #allocation6 [shape = 's32[1]{0}', space=sflag, size = 0x4, scoped, tag = 'scoped memory for tpu_custom_call.1']
    #allocation7 [shape = 'u8[262144]{0}', space=vmem, size = 0x40000, scoped, tag = 'input window, operand 2, single buffered']
    #allocation8 [shape = 'u8[512]{0}', space=vmem, size = 0x400, scoped, tag = 'output window, operand 0, single buffered']
    %9 = vsyncpa [#allocation3], 0
    %10 = vsyncpa [#allocation6], 0
    %11 = vsyncpa [#allocation4], 0
    // Predicated region
    $region2: #{tpu_custom_call.1} parent=1 // pred_check
      _
    $region3: #{tpu_custom_call.1} parent=1 // pred_check_branch
      %13 = sbr.rel (0) target = $region5
    $region4: #{tpu_custom_call.1} parent=1 // pred_region
      %s15 = ssub.s32 16, 16
      %16 = vsyncadd [#allocation3], %s15
      %s18 = sshll.u32 [#allocation2], 4
      %s19 = int_to_ptr.vmem [resolvable:$true] %s18
      %21 = dma.hbm_to_vmem [thread:$0]  %s0, 16, %s19, [#allocation3]
    $region5: #{tpu_custom_call.1} parent=1 // pred_fallthru
      _
    // Predicated region
    $region6: #{tpu_custom_call.1} parent=1 // pred_check
      _
    $region7: #{tpu_custom_call.1} parent=1 // pred_check_branch
      %23 = sbr.rel (0) target = $region9
    $region8: #{tpu_custom_call.1} parent=1 // pred_region
      %s25 = ssub.s32 4096, 4096
      %26 = vsyncadd [#allocation6], %s25
      %s27 = sshll.u32 [#allocation5], 4
      %s28 = int_to_ptr.vmem [resolvable:$true] %s27
      %33 = dma.hbm_to_vmem [thread:$0]  %s1, 4096, %s28, [#allocation6], 512, 512, 32
    $region9: #{tpu_custom_call.1} parent=1 // pred_fallthru
      _
    // Predicated region
    $region10: #{tpu_custom_call.1} parent=1 // pred_check
      _
    $region11: #{tpu_custom_call.1} parent=1 // pred_check_branch
      %35 = sbr.rel (0) target = $region13
    $region12: #{tpu_custom_call.1} parent=1 // pred_region
      %s37 = ssub.s32 8192, 8192
      %38 = vsyncadd [#allocation6], %s37
      %s39 = sshll.u32 [#allocation7], 4
      %s40 = int_to_ptr.vmem [resolvable:$true] %s39
      %45 = dma.hbm_to_vmem [thread:$0]  %s2, 8192, %s40, [#allocation6], 64, 64, 4
    $region13: #{tpu_custom_call.1} parent=1 // pred_fallthru
      _
    // Predicated region
    $region14: #{tpu_custom_call.1} parent=1 // pred_check
      _
    $region15: #{tpu_custom_call.1} parent=1 // pred_check_branch
      %47 = sbr.rel (0) target = $region17
    $region16: #{tpu_custom_call.1} parent=1 // pred_region
      _
    $region17: #{tpu_custom_call.1} parent=1 // pred_fallthru
      _
    // Predicated region
    $region18: #{tpu_custom_call.1} parent=1 // pred_check
      _
    $region19: #{tpu_custom_call.1} parent=1 // pred_check_branch
      %49 = sbr.rel (0) target = $region21
    $region20: #{tpu_custom_call.1} parent=1 // pred_region
      %50 = dma.done [#allocation3], 16
    $region21: #{tpu_custom_call.1} parent=1 // pred_fallthru
      _
    // Predicated region
    $region22: #{tpu_custom_call.1} parent=1 // pred_check
      _
    $region23: #{tpu_custom_call.1} parent=1 // pred_check_branch
      %52 = sbr.rel (0) target = $region25
    $region24: #{tpu_custom_call.1} parent=1 // pred_region
      %53 = dma.done [#allocation6], 4096
    $region25: #{tpu_custom_call.1} parent=1 // pred_fallthru
      _
    // Predicated region
    $region26: #{tpu_custom_call.1} parent=1 // pred_check
      _
    $region27: #{tpu_custom_call.1} parent=1 // pred_check_branch
      %55 = sbr.rel (0) target = $region29
    $region28: #{tpu_custom_call.1} parent=1 // pred_region
      %56 = dma.done [#allocation6], 8192
    $region29: #{tpu_custom_call.1} parent=1 // pred_fallthru
      _
    %v58 = vld [vmem:[#allocation2] sm:$0x1]
    %v59 = vpack.c.bf16 %v58, %v58
    %v60 = vld [vmem:[%s3] sm:$0xff]
    %v61 = vld [vmem:[%s3 + $0x8] sm:$0x1]
    %v62 = vld [vmem:[#allocation5] sm:$0xff]
    %v63 = vld [vmem:[#allocation5 + $0x8] sm:$0xff]
    %v64 = vld [vmem:[#allocation5 + $0x10] sm:$0xff]
    %v65 = vld [vmem:[#allocation5 + $0x18] sm:$0xff]
    %v66 = vld [vmem:[#allocation5 + $0x20] sm:$0xff]
    %v67 = vld [vmem:[#allocation5 + $0x28] sm:$0xff]
    %v68 = vld [vmem:[#allocation5 + $0x30] sm:$0xff]
    %v69 = vld [vmem:[#allocation5 + $0x38] sm:$0xff]
    %v70 = vld [vmem:[#allocation5 + $0x40] sm:$0xff]
    %v71 = vld [vmem:[#allocation5 + $0x48] sm:$0xff]
    %v72 = vld [vmem:[#allocation5 + $0x50] sm:$0xff]
    %v73 = vld [vmem:[#allocation5 + $0x58] sm:$0xff]
    %v74 = vld [vmem:[#allocation5 + $0x60] sm:$0xff]
    %v75 = vld [vmem:[#allocation5 + $0x68] sm:$0xff]
    %v76 = vld [vmem:[#allocation5 + $0x70] sm:$0xff]
    %v77 = vld [vmem:[#allocation5 + $0x78] sm:$0xff]
    %v78 = vld [vmem:[#allocation5 + $0x80] sm:$0xff]
    %v79 = vld [vmem:[#allocation5 + $0x88] sm:$0xff]
    %v80 = vld [vmem:[#allocation5 + $0x90] sm:$0xff]
    %v81 = vld [vmem:[#allocation5 + $0x98] sm:$0xff]
    %v82 = vld [vmem:[#allocation5 + $0xa0] sm:$0xff]
    %v83 = vld [vmem:[#allocation5 + $0xa8] sm:$0xff]
    %v84 = vld [vmem:[#allocation5 + $0xb0] sm:$0xff]
    %v85 = vld [vmem:[#allocation5 + $0xb8] sm:$0xff]
    %v86 = vld [vmem:[#allocation5 + $0xc0] sm:$0xff]
    %v87 = vld [vmem:[#allocation5 + $0xc8] sm:$0xff]
    %v88 = vld [vmem:[#allocation5 + $0xd0] sm:$0xff]
    %v89 = vld [vmem:[#allocation5 + $0xd8] sm:$0xff]
    %v90 = vld [vmem:[#allocation5 + $0xe0] sm:$0xff]
    %v91 = vld [vmem:[#allocation5 + $0xe8] sm:$0xff]
    %v92 = vld [vmem:[#allocation5 + $0xf0] sm:$0xff]
    %v93 = vld [vmem:[#allocation5 + $0xf8] sm:$0xff]
    %v126 = vunpack.c.l.b16 %v62
    %v127 = vunpack.c.h.b16 %v62
    %v128 = vunpack.c.l.b16 %v63
    %v129 = vunpack.c.h.b16 %v63
    %v130 = vunpack.c.l.b16 %v64
    %v131 = vunpack.c.h.b16 %v64
    %v132 = vunpack.c.l.b16 %v65
    %v133 = vunpack.c.h.b16 %v65
    %v134 = vunpack.c.l.b16 %v66
    %v135 = vunpack.c.h.b16 %v66
    %v136 = vunpack.c.l.b16 %v67
    %v137 = vunpack.c.h.b16 %v67
    %v138 = vunpack.c.l.b16 %v68
    %v139 = vunpack.c.h.b16 %v68
    %v140 = vunpack.c.l.b16 %v69
    %v141 = vunpack.c.h.b16 %v69
    %v142 = vunpack.c.l.b16 %v70
    %v143 = vunpack.c.h.b16 %v70
    %v144 = vunpack.c.l.b16 %v71
    %v145 = vunpack.c.h.b16 %v71
    %v146 = vunpack.c.l.b16 %v72
    %v147 = vunpack.c.h.b16 %v72
    %v148 = vunpack.c.l.b16 %v73
    %v149 = vunpack.c.h.b16 %v73
    %v150 = vunpack.c.l.b16 %v74
    %v151 = vunpack.c.h.b16 %v74
    %v152 = vunpack.c.l.b16 %v75
    %v153 = vunpack.c.h.b16 %v75
    %v154 = vunpack.c.l.b16 %v76
    %v155 = vunpack.c.h.b16 %v76
    %v156 = vunpack.c.l.b16 %v77
    %v157 = vunpack.c.h.b16 %v77
    %v158 = vunpack.c.l.b16 %v78
    %v159 = vunpack.c.h.b16 %v78
    %v160 = vunpack.c.l.b16 %v79
    %v161 = vunpack.c.h.b16 %v79
    %v162 = vunpack.c.l.b16 %v80
    %v163 = vunpack.c.h.b16 %v80
    %v164 = vunpack.c.l.b16 %v81
    %v165 = vunpack.c.h.b16 %v81
    %v166 = vunpack.c.l.b16 %v82
    %v167 = vunpack.c.h.b16 %v82
    %v168 = vunpack.c.l.b16 %v83
    %v169 = vunpack.c.h.b16 %v83
    %v170 = vunpack.c.l.b16 %v84
    %v171 = vunpack.c.h.b16 %v84
    %v172 = vunpack.c.l.b16 %v85
    %v173 = vunpack.c.h.b16 %v85
    %v174 = vunpack.c.l.b16 %v86
    %v175 = vunpack.c.h.b16 %v86
    %v176 = vunpack.c.l.b16 %v87
    %v177 = vunpack.c.h.b16 %v87
    %v178 = vunpack.c.l.b16 %v88
    %v179 = vunpack.c.h.b16 %v88
    %v180 = vunpack.c.l.b16 %v89
    %v181 = vunpack.c.h.b16 %v89
    %v182 = vunpack.c.l.b16 %v90
    %v183 = vunpack.c.h.b16 %v90
    %v184 = vunpack.c.l.b16 %v91
    %v185 = vunpack.c.h.b16 %v91
    %v186 = vunpack.c.l.b16 %v92
    %v187 = vunpack.c.h.b16 %v92
    %v188 = vunpack.c.l.b16 %v93
    %v189 = vunpack.c.h.b16 %v93
    %v190 = vpack.c.b16 %v134, %v126
    %v191 = vpack.c.b16 %v135, %v127
    %v192 = vpack.c.b16 %v136, %v128
    %v193 = vpack.c.b16 %v137, %v129
    %v194 = vpack.c.b16 %v138, %v130
    %v195 = vpack.c.b16 %v139, %v131
    %v196 = vpack.c.b16 %v140, %v132
    %v197 = vpack.c.b16 %v141, %v133
    %v198 = vpack.c.b16 %v150, %v142
    %v199 = vpack.c.b16 %v151, %v143
    %v200 = vpack.c.b16 %v152, %v144
    %v201 = vpack.c.b16 %v153, %v145
    %v202 = vpack.c.b16 %v154, %v146
    %v203 = vpack.c.b16 %v155, %v147
    %v204 = vpack.c.b16 %v156, %v148
    %v205 = vpack.c.b16 %v157, %v149
    %v206 = vpack.c.b16 %v166, %v158
    %v207 = vpack.c.b16 %v167, %v159
    %v208 = vpack.c.b16 %v168, %v160
    %v209 = vpack.c.b16 %v169, %v161
    %v210 = vpack.c.b16 %v170, %v162
    %v211 = vpack.c.b16 %v171, %v163
    %v212 = vpack.c.b16 %v172, %v164
    %v213 = vpack.c.b16 %v173, %v165
    %v214 = vpack.c.b16 %v182, %v174
    %v215 = vpack.c.b16 %v183, %v175
    %v216 = vpack.c.b16 %v184, %v176
    %v217 = vpack.c.b16 %v185, %v177
    %v218 = vpack.c.b16 %v186, %v178
    %v219 = vpack.c.b16 %v187, %v179
    %v220 = vpack.c.b16 %v188, %v180
    %v221 = vpack.c.b16 %v189, %v181
    %v255 = vlaneseq
    %v256 = vshrl.u32 %v255, 7
    %v257 = vsub.s32 0, %v256
    %v258 = vrot.slane %v60, %v257
    %v259 = vlaneseq
    %v260 = vshrl.u32 %v259, 7
    %v261 = vsub.s32 1, %v260
    %v262 = vrot.slane %v60, %v261
    %v263 = vlaneseq
    %v264 = vshrl.u32 %v263, 7
    %v265 = vsub.s32 2, %v264
    %v266 = vrot.slane %v60, %v265
    %v267 = vlaneseq
    %v268 = vshrl.u32 %v267, 7
    %v269 = vsub.s32 3, %v268
    %v270 = vrot.slane %v60, %v269
    %v271 = vlaneseq
    %v272 = vshrl.u32 %v271, 7
    %v273 = vsub.s32 4, %v272
    %v274 = vrot.slane %v60, %v273
    %v275 = vlaneseq
    %v276 = vshrl.u32 %v275, 7
    %v277 = vsub.s32 5, %v276
    %v278 = vrot.slane %v60, %v277
    %v279 = vlaneseq
    %v280 = vshrl.u32 %v279, 7
    %v281 = vsub.s32 6, %v280
    %v282 = vrot.slane %v60, %v281
    %v283 = vlaneseq
    %v284 = vshrl.u32 %v283, 7
    %v285 = vsub.s32 7, %v284
    %v286 = vrot.slane %v60, %v285
    %vm295 = vcmask 523264
    %v297 = vsel %vm295, %v59, 0
    %299 = vmatprep.subr.bf16.mxu0 %v191
    %300 = vmatpush1.bf16.msra.mxu0 %v190
    %301 = vmatprep.subr.bf16.mxu0 %v199
    %302 = vmatpush1.bf16.msra.mxu0 %v198
    %303 = vmatprep.subr.bf16.mxu0 %v207
    %304 = vmatpush1.bf16.msra.mxu0 %v206
    %305 = vmatprep.subr.bf16.mxu0 %v215
    %306 = vmatpush1.bf16.msra.mxu0 %v214
    %307 = vmatprep.subr.bf16.mxu0 0
    %308 = vmatpush1.bf16.msra.mxu0 0
    %309 = vmatprep.subr.bf16.mxu0 0
    %310 = vmatpush1.bf16.msra.mxu0 0
    %311 = vmatprep.subr.bf16.mxu0 0
    %312 = vmatpush1.bf16.msra.mxu0 0
    %313 = vmatprep.subr.bf16.mxu0 0
    %314 = vmatpush1.bf16.msra.mxu0 0
    %315 = vmatprep.subr.bf16.mxu0 0
    %316 = vmatpush1.bf16.msra.mxu0 0
    %317 = vmatprep.subr.bf16.mxu0 0
    %318 = vmatpush1.bf16.msra.mxu0 0
    %319 = vmatprep.subr.bf16.mxu0 0
    %320 = vmatpush1.bf16.msra.mxu0 0
    %321 = vmatprep.subr.bf16.mxu0 0
    %322 = vmatpush1.bf16.msra.mxu0 0
    %323 = vmatprep.subr.bf16.mxu0 0
    %324 = vmatpush1.bf16.msra.mxu0 0
    %325 = vmatprep.subr.bf16.mxu0 0
    %326 = vmatpush1.bf16.msra.mxu0 0
    %327 = vmatprep.subr.bf16.mxu0 0
    %328 = vmatpush1.bf16.msra.mxu0 0
    %329 = vmatprep.subr.bf16.mxu0 0
    %330 = vmatpush1.bf16.msra.mxu0 0
    %331 = vmatprep.mubr.bf16.mxu0 0
    %332 = vmatmul.mubr.bf16.gmra.mrb[0].mxu0 %v297
    %v333 = vpop.f32.mrb[0].mxu0
    %v334 = vadd.f32 %v258, %v333
    %v335 = vpop.f32.mrb[0].mxu0
    %v336 = vadd.f32 %v262, %v335
    %v337 = vpop.f32.mrb[0].mxu0
    %v338 = vpop.f32.mrb[0].mxu0
    %339 = vdwg.mxu0
    %340 = vmatprep.subr.bf16.mxu0 %v193
    %341 = vmatpush1.bf16.msra.mxu0 %v192
    %342 = vmatprep.subr.bf16.mxu0 %v201
    %343 = vmatpush1.bf16.msra.mxu0 %v200
    %344 = vmatprep.subr.bf16.mxu0 %v209
    %345 = vmatpush1.bf16.msra.mxu0 %v208
    %346 = vmatprep.subr.bf16.mxu0 %v217
    %347 = vmatpush1.bf16.msra.mxu0 %v216
    %348 = vmatprep.subr.bf16.mxu0 0
    %349 = vmatpush1.bf16.msra.mxu0 0
    %350 = vmatprep.subr.bf16.mxu0 0
    %351 = vmatpush1.bf16.msra.mxu0 0
    %352 = vmatprep.subr.bf16.mxu0 0
    %353 = vmatpush1.bf16.msra.mxu0 0
    %354 = vmatprep.subr.bf16.mxu0 0
    %355 = vmatpush1.bf16.msra.mxu0 0
    %356 = vmatprep.subr.bf16.mxu0 0
    %357 = vmatpush1.bf16.msra.mxu0 0
    %358 = vmatprep.subr.bf16.mxu0 0
    %359 = vmatpush1.bf16.msra.mxu0 0
    %360 = vmatprep.subr.bf16.mxu0 0
    %361 = vmatpush1.bf16.msra.mxu0 0
    %362 = vmatprep.subr.bf16.mxu0 0
    %363 = vmatpush1.bf16.msra.mxu0 0
    %364 = vmatprep.subr.bf16.mxu0 0
    %365 = vmatpush1.bf16.msra.mxu0 0
    %366 = vmatprep.subr.bf16.mxu0 0
    %367 = vmatpush1.bf16.msra.mxu0 0
    %368 = vmatprep.subr.bf16.mxu0 0
    %369 = vmatpush1.bf16.msra.mxu0 0
    %370 = vmatprep.subr.bf16.mxu0 0
    %371 = vmatpush1.bf16.msra.mxu0 0
    %372 = vmatprep.mubr.bf16.mxu0 0
    %373 = vmatmul.mubr.bf16.gmra.mrb[0].mxu0 %v297
    %v374 = vpop.f32.mrb[0].mxu0
    %v375 = vadd.f32 %v266, %v374
    %v376 = vpop.f32.mrb[0].mxu0
    %v377 = vadd.f32 %v270, %v376
    %v378 = vpop.f32.mrb[0].mxu0
    %v379 = vpop.f32.mrb[0].mxu0
    %380 = vdwg.mxu0
    %381 = vmatprep.subr.bf16.mxu0 %v195
    %382 = vmatpush1.bf16.msra.mxu0 %v194
    %383 = vmatprep.subr.bf16.mxu0 %v203
    %384 = vmatpush1.bf16.msra.mxu0 %v202
    %385 = vmatprep.subr.bf16.mxu0 %v211
    %386 = vmatpush1.bf16.msra.mxu0 %v210
    %387 = vmatprep.subr.bf16.mxu0 %v219
    %388 = vmatpush1.bf16.msra.mxu0 %v218
    %389 = vmatprep.subr.bf16.mxu0 0
    %390 = vmatpush1.bf16.msra.mxu0 0
    %391 = vmatprep.subr.bf16.mxu0 0
    %392 = vmatpush1.bf16.msra.mxu0 0
    %393 = vmatprep.subr.bf16.mxu0 0
    %394 = vmatpush1.bf16.msra.mxu0 0
    %395 = vmatprep.subr.bf16.mxu0 0
    %396 = vmatpush1.bf16.msra.mxu0 0
    %397 = vmatprep.subr.bf16.mxu0 0
    %398 = vmatpush1.bf16.msra.mxu0 0
    %399 = vmatprep.subr.bf16.mxu0 0
    %400 = vmatpush1.bf16.msra.mxu0 0
    %401 = vmatprep.subr.bf16.mxu0 0
    %402 = vmatpush1.bf16.msra.mxu0 0
    %403 = vmatprep.subr.bf16.mxu0 0
    %404 = vmatpush1.bf16.msra.mxu0 0
    %405 = vmatprep.subr.bf16.mxu0 0
    %406 = vmatpush1.bf16.msra.mxu0 0
    %407 = vmatprep.subr.bf16.mxu0 0
    %408 = vmatpush1.bf16.msra.mxu0 0
    %409 = vmatprep.subr.bf16.mxu0 0
    %410 = vmatpush1.bf16.msra.mxu0 0
    %411 = vmatprep.subr.bf16.mxu0 0
    %412 = vmatpush1.bf16.msra.mxu0 0
    %413 = vmatprep.mubr.bf16.mxu0 0
    %414 = vmatmul.mubr.bf16.gmra.mrb[0].mxu0 %v297
    %v415 = vpop.f32.mrb[0].mxu0
    %v416 = vadd.f32 %v274, %v415
    %v417 = vpop.f32.mrb[0].mxu0
    %v418 = vadd.f32 %v278, %v417
    %v419 = vpop.f32.mrb[0].mxu0
    %v420 = vpop.f32.mrb[0].mxu0
    %421 = vdwg.mxu0
    %422 = vmatprep.subr.bf16.mxu0 %v197
    %423 = vmatpush1.bf16.msra.mxu0 %v196
    %424 = vmatprep.subr.bf16.mxu0 %v205
    %425 = vmatpush1.bf16.msra.mxu0 %v204
    %426 = vmatprep.subr.bf16.mxu0 %v213
    %427 = vmatpush1.bf16.msra.mxu0 %v212
    %428 = vmatprep.subr.bf16.mxu0 %v221
    %429 = vmatpush1.bf16.msra.mxu0 %v220
    %430 = vmatprep.subr.bf16.mxu0 0
    %431 = vmatpush1.bf16.msra.mxu0 0
    %432 = vmatprep.subr.bf16.mxu0 0
    %433 = vmatpush1.bf16.msra.mxu0 0
    %434 = vmatprep.subr.bf16.mxu0 0
    %435 = vmatpush1.bf16.msra.mxu0 0
    %436 = vmatprep.subr.bf16.mxu0 0
    %437 = vmatpush1.bf16.msra.mxu0 0
    %438 = vmatprep.subr.bf16.mxu0 0
    %439 = vmatpush1.bf16.msra.mxu0 0
    %440 = vmatprep.subr.bf16.mxu0 0
    %441 = vmatpush1.bf16.msra.mxu0 0
    %442 = vmatprep.subr.bf16.mxu0 0
    %443 = vmatpush1.bf16.msra.mxu0 0
    %444 = vmatprep.subr.bf16.mxu0 0
    %445 = vmatpush1.bf16.msra.mxu0 0
    %446 = vmatprep.subr.bf16.mxu0 0
    %447 = vmatpush1.bf16.msra.mxu0 0
    %448 = vmatprep.subr.bf16.mxu0 0
    %449 = vmatpush1.bf16.msra.mxu0 0
    %450 = vmatprep.subr.bf16.mxu0 0
    %451 = vmatpush1.bf16.msra.mxu0 0
    %452 = vmatprep.subr.bf16.mxu0 0
    %453 = vmatpush1.bf16.msra.mxu0 0
    %454 = vmatprep.mubr.bf16.mxu0 0
    %455 = vmatmul.mubr.bf16.gmra.mrb[0].mxu0 %v297
    %v456 = vpop.f32.mrb[0].mxu0
    %v457 = vadd.f32 %v282, %v456
    %v458 = vpop.f32.mrb[0].mxu0
    %v459 = vadd.f32 %v286, %v458
    %v460 = vpop.f32.mrb[0].mxu0
    %v461 = vpop.f32.mrb[0].mxu0
    %462 = vdwg.mxu0
    %v463 = vpack.c.bf16 %v334, %v334
    %v464 = vpack.c.bf16 %v336, %v336
    %v465 = vpack.c.bf16 %v375, %v375
    %v466 = vpack.c.bf16 %v377, %v377
    %v467 = vpack.c.bf16 %v416, %v416
    %v468 = vpack.c.bf16 %v418, %v418
    %v469 = vpack.c.bf16 %v457, %v457
    %v470 = vpack.c.bf16 %v459, %v459
    %v471 = vld [vmem:[#allocation7] sm:$0xf]
    %v472 = vld [vmem:[#allocation7 + $0x4] sm:$0xf]
    %v473 = vld [vmem:[#allocation7 + $0x8] sm:$0xf]
    %v474 = vld [vmem:[#allocation7 + $0xc] sm:$0xf]
    %v475 = vld [vmem:[#allocation7 + $0x10] sm:$0xf]
    %v476 = vld [vmem:[#allocation7 + $0x14] sm:$0xf]
    %v477 = vld [vmem:[#allocation7 + $0x18] sm:$0xf]
    %v478 = vld [vmem:[#allocation7 + $0x1c] sm:$0xf]
    %v479 = vld [vmem:[#allocation7 + $0x20] sm:$0xf]
    %v480 = vld [vmem:[#allocation7 + $0x24] sm:$0xf]
    %v481 = vld [vmem:[#allocation7 + $0x28] sm:$0xf]
    %v482 = vld [vmem:[#allocation7 + $0x2c] sm:$0xf]
    %v483 = vld [vmem:[#allocation7 + $0x30] sm:$0xf]
    %v484 = vld [vmem:[#allocation7 + $0x34] sm:$0xf]
    %v485 = vld [vmem:[#allocation7 + $0x38] sm:$0xf]
    %v486 = vld [vmem:[#allocation7 + $0x3c] sm:$0xf]
    %v487 = vld [vmem:[#allocation7 + $0x40] sm:$0xf]
    %v488 = vld [vmem:[#allocation7 + $0x44] sm:$0xf]
    %v489 = vld [vmem:[#allocation7 + $0x48] sm:$0xf]
    %v490 = vld [vmem:[#allocation7 + $0x4c] sm:$0xf]
    %v491 = vld [vmem:[#allocation7 + $0x50] sm:$0xf]
    %v492 = vld [vmem:[#allocation7 + $0x54] sm:$0xf]
    %v493 = vld [vmem:[#allocation7 + $0x58] sm:$0xf]
    %v494 = vld [vmem:[#allocation7 + $0x5c] sm:$0xf]
    %v495 = vld [vmem:[#allocation7 + $0x60] sm:$0xf]
    %v496 = vld [vmem:[#allocation7 + $0x64] sm:$0xf]
    %v497 = vld [vmem:[#allocation7 + $0x68] sm:$0xf]
    %v498 = vld [vmem:[#allocation7 + $0x6c] sm:$0xf]
    %v499 = vld [vmem:[#allocation7 + $0x70] sm:$0xf]
    %v500 = vld [vmem:[#allocation7 + $0x74] sm:$0xf]
    %v501 = vld [vmem:[#allocation7 + $0x78] sm:$0xf]
    %v502 = vld [vmem:[#allocation7 + $0x7c] sm:$0xf]
    %v503 = vld [vmem:[#allocation7 + $0x80] sm:$0xf]
    %v504 = vld [vmem:[#allocation7 + $0x84] sm:$0xf]
    %v505 = vld [vmem:[#allocation7 + $0x88] sm:$0xf]
    %v506 = vld [vmem:[#allocation7 + $0x8c] sm:$0xf]
    %v507 = vld [vmem:[#allocation7 + $0x90] sm:$0xf]
    %v508 = vld [vmem:[#allocation7 + $0x94] sm:$0xf]
    %v509 = vld [vmem:[#allocation7 + $0x98] sm:$0xf]
    %v510 = vld [vmem:[#allocation7 + $0x9c] sm:$0xf]
    %v511 = vld [vmem:[#allocation7 + $0xa0] sm:$0xf]
    %v512 = vld [vmem:[#allocation7 + $0xa4] sm:$0xf]
    %v513 = vld [vmem:[#allocation7 + $0xa8] sm:$0xf]
    %v514 = vld [vmem:[#allocation7 + $0xac] sm:$0xf]
    %v515 = vld [vmem:[#allocation7 + $0xb0] sm:$0xf]
    %v516 = vld [vmem:[#allocation7 + $0xb4] sm:$0xf]
    %v517 = vld [vmem:[#allocation7 + $0xb8] sm:$0xf]
    %v518 = vld [vmem:[#allocation7 + $0xbc] sm:$0xf]
    %v519 = vld [vmem:[#allocation7 + $0xc0] sm:$0xf]
    %v520 = vld [vmem:[#allocation7 + $0xc4] sm:$0xf]
    %v521 = vld [vmem:[#allocation7 + $0xc8] sm:$0xf]
    %v522 = vld [vmem:[#allocation7 + $0xcc] sm:$0xf]
    %v523 = vld [vmem:[#allocation7 + $0xd0] sm:$0xf]
    %v524 = vld [vmem:[#allocation7 + $0xd4] sm:$0xf]
    %v525 = vld [vmem:[#allocation7 + $0xd8] sm:$0xf]
    %v526 = vld [vmem:[#allocation7 + $0xdc] sm:$0xf]
    %v527 = vld [vmem:[#allocation7 + $0xe0] sm:$0xf]
    %v528 = vld [vmem:[#allocation7 + $0xe4] sm:$0xf]
    %v529 = vld [vmem:[#allocation7 + $0xe8] sm:$0xf]
    %v530 = vld [vmem:[#allocation7 + $0xec] sm:$0xf]
    %v531 = vld [vmem:[#allocation7 + $0xf0] sm:$0xf]
    %v532 = vld [vmem:[#allocation7 + $0xf4] sm:$0xf]
    %v533 = vld [vmem:[#allocation7 + $0xf8] sm:$0xf]
    %v534 = vld [vmem:[#allocation7 + $0xfc] sm:$0xf]
    %v535 = vld [vmem:[#allocation7 + $0x100] sm:$0xf]
    %v536 = vld [vmem:[#allocation7 + $0x104] sm:$0xf]
    %v537 = vld [vmem:[#allocation7 + $0x108] sm:$0xf]
    %v538 = vld [vmem:[#allocation7 + $0x10c] sm:$0xf]
    %v539 = vld [vmem:[#allocation7 + $0x110] sm:$0xf]
    %v540 = vld [vmem:[#allocation7 + $0x114] sm:$0xf]
    %v541 = vld [vmem:[#allocation7 + $0x118] sm:$0xf]
    %v542 = vld [vmem:[#allocation7 + $0x11c] sm:$0xf]
    %v543 = vld [vmem:[#allocation7 + $0x120] sm:$0xf]
    %v544 = vld [vmem:[#allocation7 + $0x124] sm:$0xf]
    %v545 = vld [vmem:[#allocation7 + $0x128] sm:$0xf]
    %v546 = vld [vmem:[#allocation7 + $0x12c] sm:$0xf]
    %v547 = vld [vmem:[#allocation7 + $0x130] sm:$0xf]
    %v548 = vld [vmem:[#allocation7 + $0x134] sm:$0xf]
    %v549 = vld [vmem:[#allocation7 + $0x138] sm:$0xf]
    %v550 = vld [vmem:[#allocation7 + $0x13c] sm:$0xf]
    %v551 = vld [vmem:[#allocation7 + $0x140] sm:$0xf]
    %v552 = vld [vmem:[#allocation7 + $0x144] sm:$0xf]
    %v553 = vld [vmem:[#allocation7 + $0x148] sm:$0xf]
    %v554 = vld [vmem:[#allocation7 + $0x14c] sm:$0xf]
    %v555 = vld [vmem:[#allocation7 + $0x150] sm:$0xf]
    %v556 = vld [vmem:[#allocation7 + $0x154] sm:$0xf]
    %v557 = vld [vmem:[#allocation7 + $0x158] sm:$0xf]
    %v558 = vld [vmem:[#allocation7 + $0x15c] sm:$0xf]
    %v559 = vld [vmem:[#allocation7 + $0x160] sm:$0xf]
    %v560 = vld [vmem:[#allocation7 + $0x164] sm:$0xf]
    %v561 = vld [vmem:[#allocation7 + $0x168] sm:$0xf]
    %v562 = vld [vmem:[#allocation7 + $0x16c] sm:$0xf]
    %v563 = vld [vmem:[#allocation7 + $0x170] sm:$0xf]
    %v564 = vld [vmem:[#allocation7 + $0x174] sm:$0xf]
    %v565 = vld [vmem:[#allocation7 + $0x178] sm:$0xf]
    %v566 = vld [vmem:[#allocation7 + $0x17c] sm:$0xf]
    %v567 = vld [vmem:[#allocation7 + $0x180] sm:$0xf]
    %v568 = vld [vmem:[#allocation7 + $0x184] sm:$0xf]
    %v569 = vld [vmem:[#allocation7 + $0x188] sm:$0xf]
    %v570 = vld [vmem:[#allocation7 + $0x18c] sm:$0xf]
    %v571 = vld [vmem:[#allocation7 + $0x190] sm:$0xf]
    %v572 = vld [vmem:[#allocation7 + $0x194] sm:$0xf]
    %v573 = vld [vmem:[#allocation7 + $0x198] sm:$0xf]
    %v574 = vld [vmem:[#allocation7 + $0x19c] sm:$0xf]
    %v575 = vld [vmem:[#allocation7 + $0x1a0] sm:$0xf]
    %v576 = vld [vmem:[#allocation7 + $0x1a4] sm:$0xf]
    %v577 = vld [vmem:[#allocation7 + $0x1a8] sm:$0xf]
    %v578 = vld [vmem:[#allocation7 + $0x1ac] sm:$0xf]
    %v579 = vld [vmem:[#allocation7 + $0x1b0] sm:$0xf]
    %v580 = vld [vmem:[#allocation7 + $0x1b4] sm:$0xf]
    %v581 = vld [vmem:[#allocation7 + $0x1b8] sm:$0xf]
    %v582 = vld [vmem:[#allocation7 + $0x1bc] sm:$0xf]
    %v583 = vld [vmem:[#allocation7 + $0x1c0] sm:$0xf]
    %v584 = vld [vmem:[#allocation7 + $0x1c4] sm:$0xf]
    %v585 = vld [vmem:[#allocation7 + $0x1c8] sm:$0xf]
    %v586 = vld [vmem:[#allocation7 + $0x1cc] sm:$0xf]
    %v587 = vld [vmem:[#allocation7 + $0x1d0] sm:$0xf]
    %v588 = vld [vmem:[#allocation7 + $0x1d4] sm:$0xf]
    %v589 = vld [vmem:[#allocation7 + $0x1d8] sm:$0xf]
    %v590 = vld [vmem:[#allocation7 + $0x1dc] sm:$0xf]
    %v591 = vld [vmem:[#allocation7 + $0x1e0] sm:$0xf]
    %v592 = vld [vmem:[#allocation7 + $0x1e4] sm:$0xf]
    %v593 = vld [vmem:[#allocation7 + $0x1e8] sm:$0xf]
    %v594 = vld [vmem:[#allocation7 + $0x1ec] sm:$0xf]
    %v595 = vld [vmem:[#allocation7 + $0x1f0] sm:$0xf]
    %v596 = vld [vmem:[#allocation7 + $0x1f4] sm:$0xf]
    %v597 = vld [vmem:[#allocation7 + $0x1f8] sm:$0xf]
    %v598 = vld [vmem:[#allocation7 + $0x1fc] sm:$0xf]
    %v727 = vunpack.c.l.b16 %v471
    %v728 = vunpack.c.l.b16 %v472
    %v729 = vunpack.c.l.b16 %v473
    %v730 = vunpack.c.l.b16 %v474
    %v731 = vunpack.c.l.b16 %v475
    %v732 = vunpack.c.l.b16 %v476
    %v733 = vunpack.c.l.b16 %v477
    %v734 = vunpack.c.l.b16 %v478
    %v735 = vunpack.c.l.b16 %v479
    %v736 = vunpack.c.l.b16 %v480
    %v737 = vunpack.c.l.b16 %v481
    %v738 = vunpack.c.l.b16 %v482
    %v739 = vunpack.c.l.b16 %v483
    %v740 = vunpack.c.l.b16 %v484
    %v741 = vunpack.c.l.b16 %v485
    %v742 = vunpack.c.l.b16 %v486
    %v743 = vunpack.c.l.b16 %v487
    %v744 = vunpack.c.l.b16 %v488
    %v745 = vunpack.c.l.b16 %v489
    %v746 = vunpack.c.l.b16 %v490
    %v747 = vunpack.c.l.b16 %v491
    %v748 = vunpack.c.l.b16 %v492
    %v749 = vunpack.c.l.b16 %v493
    %v750 = vunpack.c.l.b16 %v494
    %v751 = vunpack.c.l.b16 %v495
    %v752 = vunpack.c.l.b16 %v496
    %v753 = vunpack.c.l.b16 %v497
    %v754 = vunpack.c.l.b16 %v498
    %v755 = vunpack.c.l.b16 %v499
    %v756 = vunpack.c.l.b16 %v500
    %v757 = vunpack.c.l.b16 %v501
    %v758 = vunpack.c.l.b16 %v502
    %v759 = vunpack.c.l.b16 %v503
    %v760 = vunpack.c.l.b16 %v504
    %v761 = vunpack.c.l.b16 %v505
    %v762 = vunpack.c.l.b16 %v506
    %v763 = vunpack.c.l.b16 %v507
    %v764 = vunpack.c.l.b16 %v508
    %v765 = vunpack.c.l.b16 %v509
    %v766 = vunpack.c.l.b16 %v510
    %v767 = vunpack.c.l.b16 %v511
    %v768 = vunpack.c.l.b16 %v512
    %v769 = vunpack.c.l.b16 %v513
    %v770 = vunpack.c.l.b16 %v514
    %v771 = vunpack.c.l.b16 %v515
    %v772 = vunpack.c.l.b16 %v516
    %v773 = vunpack.c.l.b16 %v517
    %v774 = vunpack.c.l.b16 %v518
    %v775 = vunpack.c.l.b16 %v519
    %v776 = vunpack.c.l.b16 %v520
    %v777 = vunpack.c.l.b16 %v521
    %v778 = vunpack.c.l.b16 %v522
    %v779 = vunpack.c.l.b16 %v523
    %v780 = vunpack.c.l.b16 %v524
    %v781 = vunpack.c.l.b16 %v525
    %v782 = vunpack.c.l.b16 %v526
    %v783 = vunpack.c.l.b16 %v527
    %v784 = vunpack.c.l.b16 %v528
    %v785 = vunpack.c.l.b16 %v529
    %v786 = vunpack.c.l.b16 %v530
    %v787 = vunpack.c.l.b16 %v531
    %v788 = vunpack.c.l.b16 %v532
    %v789 = vunpack.c.l.b16 %v533
    %v790 = vunpack.c.l.b16 %v534
    %v791 = vunpack.c.l.b16 %v535
    %v792 = vunpack.c.l.b16 %v536
    %v793 = vunpack.c.l.b16 %v537
    %v794 = vunpack.c.l.b16 %v538
    %v795 = vunpack.c.l.b16 %v539
    %v796 = vunpack.c.l.b16 %v540
    %v797 = vunpack.c.l.b16 %v541
    %v798 = vunpack.c.l.b16 %v542
    %v799 = vunpack.c.l.b16 %v543
    %v800 = vunpack.c.l.b16 %v544
    %v801 = vunpack.c.l.b16 %v545
    %v802 = vunpack.c.l.b16 %v546
    %v803 = vunpack.c.l.b16 %v547
    %v804 = vunpack.c.l.b16 %v548
    %v805 = vunpack.c.l.b16 %v549
    %v806 = vunpack.c.l.b16 %v550
    %v807 = vunpack.c.l.b16 %v551
    %v808 = vunpack.c.l.b16 %v552
    %v809 = vunpack.c.l.b16 %v553
    %v810 = vunpack.c.l.b16 %v554
    %v811 = vunpack.c.l.b16 %v555
    %v812 = vunpack.c.l.b16 %v556
    %v813 = vunpack.c.l.b16 %v557
    %v814 = vunpack.c.l.b16 %v558
    %v815 = vunpack.c.l.b16 %v559
    %v816 = vunpack.c.l.b16 %v560
    %v817 = vunpack.c.l.b16 %v561
    %v818 = vunpack.c.l.b16 %v562
    %v819 = vunpack.c.l.b16 %v563
    %v820 = vunpack.c.l.b16 %v564
    %v821 = vunpack.c.l.b16 %v565
    %v822 = vunpack.c.l.b16 %v566
    %v823 = vunpack.c.l.b16 %v567
    %v824 = vunpack.c.l.b16 %v568
    %v825 = vunpack.c.l.b16 %v569
    %v826 = vunpack.c.l.b16 %v570
    %v827 = vunpack.c.l.b16 %v571
    %v828 = vunpack.c.l.b16 %v572
    %v829 = vunpack.c.l.b16 %v573
    %v830 = vunpack.c.l.b16 %v574
    %v831 = vunpack.c.l.b16 %v575
    %v832 = vunpack.c.l.b16 %v576
    %v833 = vunpack.c.l.b16 %v577
    %v834 = vunpack.c.l.b16 %v578
    %v835 = vunpack.c.l.b16 %v579
    %v836 = vunpack.c.l.b16 %v580
    %v837 = vunpack.c.l.b16 %v581
    %v838 = vunpack.c.l.b16 %v582
    %v839 = vunpack.c.l.b16 %v583
    %v840 = vunpack.c.l.b16 %v584
    %v841 = vunpack.c.l.b16 %v585
    %v842 = vunpack.c.l.b16 %v586
    %v843 = vunpack.c.l.b16 %v587
    %v844 = vunpack.c.l.b16 %v588
    %v845 = vunpack.c.l.b16 %v589
    %v846 = vunpack.c.l.b16 %v590
    %v847 = vunpack.c.l.b16 %v591
    %v848 = vunpack.c.l.b16 %v592
    %v849 = vunpack.c.l.b16 %v593
    %v850 = vunpack.c.l.b16 %v594
    %v851 = vunpack.c.l.b16 %v595
    %v852 = vunpack.c.l.b16 %v596
    %v853 = vunpack.c.l.b16 %v597
    %v854 = vunpack.c.l.b16 %v598
    %v855 = vpack.c.b16 %v728, %v727
    %v856 = vpack.c.b16 %v730, %v729
    %v857 = vpack.c.b16 %v732, %v731
    %v858 = vpack.c.b16 %v734, %v733
    %v859 = vpack.c.b16 %v736, %v735
    %v860 = vpack.c.b16 %v738, %v737
    %v861 = vpack.c.b16 %v740, %v739
    %v862 = vpack.c.b16 %v742, %v741
    %v863 = vpack.c.b16 %v744, %v743
    %v864 = vpack.c.b16 %v746, %v745
    %v865 = vpack.c.b16 %v748, %v747
    %v866 = vpack.c.b16 %v750, %v749
    %v867 = vpack.c.b16 %v752, %v751
    %v868 = vpack.c.b16 %v754, %v753
    %v869 = vpack.c.b16 %v756, %v755
    %v870 = vpack.c.b16 %v758, %v757
    %v871 = vpack.c.b16 %v760, %v759
    %v872 = vpack.c.b16 %v762, %v761
    %v873 = vpack.c.b16 %v764, %v763
    %v874 = vpack.c.b16 %v766, %v765
    %v875 = vpack.c.b16 %v768, %v767
    %v876 = vpack.c.b16 %v770, %v769
    %v877 = vpack.c.b16 %v772, %v771
    %v878 = vpack.c.b16 %v774, %v773
    %v879 = vpack.c.b16 %v776, %v775
    %v880 = vpack.c.b16 %v778, %v777
    %v881 = vpack.c.b16 %v780, %v779
    %v882 = vpack.c.b16 %v782, %v781
    %v883 = vpack.c.b16 %v784, %v783
    %v884 = vpack.c.b16 %v786, %v785
    %v885 = vpack.c.b16 %v788, %v787
    %v886 = vpack.c.b16 %v790, %v789
    %v887 = vpack.c.b16 %v792, %v791
    %v888 = vpack.c.b16 %v794, %v793
    %v889 = vpack.c.b16 %v796, %v795
    %v890 = vpack.c.b16 %v798, %v797
    %v891 = vpack.c.b16 %v800, %v799
    %v892 = vpack.c.b16 %v802, %v801
    %v893 = vpack.c.b16 %v804, %v803
    %v894 = vpack.c.b16 %v806, %v805
    %v895 = vpack.c.b16 %v808, %v807
    %v896 = vpack.c.b16 %v810, %v809
    %v897 = vpack.c.b16 %v812, %v811
    %v898 = vpack.c.b16 %v814, %v813
    %v899 = vpack.c.b16 %v816, %v815
    %v900 = vpack.c.b16 %v818, %v817
    %v901 = vpack.c.b16 %v820, %v819
    %v902 = vpack.c.b16 %v822, %v821
    %v903 = vpack.c.b16 %v824, %v823
    %v904 = vpack.c.b16 %v826, %v825
    %v905 = vpack.c.b16 %v828, %v827
    %v906 = vpack.c.b16 %v830, %v829
    %v907 = vpack.c.b16 %v832, %v831
    %v908 = vpack.c.b16 %v834, %v833
    %v909 = vpack.c.b16 %v836, %v835
    %v910 = vpack.c.b16 %v838, %v837
    %v911 = vpack.c.b16 %v840, %v839
    %v912 = vpack.c.b16 %v842, %v841
    %v913 = vpack.c.b16 %v844, %v843
    %v914 = vpack.c.b16 %v846, %v845
    %v915 = vpack.c.b16 %v848, %v847
    %v916 = vpack.c.b16 %v850, %v849
    %v917 = vpack.c.b16 %v852, %v851
    %v918 = vpack.c.b16 %v854, %v853
    %983 = vmatprep.subr.bf16.mxu0 0
    %984 = vmatpush1.bf16.msra.mxu0 %v855
    %985 = vmatprep.subr.bf16.mxu0 0
    %986 = vmatpush1.bf16.msra.mxu0 %v856
    %987 = vmatprep.subr.bf16.mxu0 0
    %988 = vmatpush1.bf16.msra.mxu0 %v857
    %989 = vmatprep.subr.bf16.mxu0 0
    %990 = vmatpush1.bf16.msra.mxu0 %v858
    %991 = vmatprep.subr.bf16.mxu0 0
    %992 = vmatpush1.bf16.msra.mxu0 %v859
    %993 = vmatprep.subr.bf16.mxu0 0
    %994 = vmatpush1.bf16.msra.mxu0 %v860
    %995 = vmatprep.subr.bf16.mxu0 0
    %996 = vmatpush1.bf16.msra.mxu0 %v861
    %997 = vmatprep.subr.bf16.mxu0 0
    %998 = vmatpush1.bf16.msra.mxu0 %v862
    %999 = vmatprep.subr.bf16.mxu0 0
    %1000 = vmatpush1.bf16.msra.mxu0 %v863
    %1001 = vmatprep.subr.bf16.mxu0 0
    %1002 = vmatpush1.bf16.msra.mxu0 %v864
    %1003 = vmatprep.subr.bf16.mxu0 0
    %1004 = vmatpush1.bf16.msra.mxu0 %v865
    %1005 = vmatprep.subr.bf16.mxu0 0
    %1006 = vmatpush1.bf16.msra.mxu0 %v866
    %1007 = vmatprep.subr.bf16.mxu0 0
    %1008 = vmatpush1.bf16.msra.mxu0 %v867
    %1009 = vmatprep.subr.bf16.mxu0 0
    %1010 = vmatpush1.bf16.msra.mxu0 %v868
    %1011 = vmatprep.subr.bf16.mxu0 0
    %1012 = vmatpush1.bf16.msra.mxu0 %v869
    %1013 = vmatprep.subr.bf16.mxu0 0
    %1014 = vmatpush1.bf16.msra.mxu0 %v870
    %1015 = vmatprep.mubr.bf16.mxu0 %v464
    %1016 = vmatmul.mubr.bf16.gmra.mrb[0].mxu0 %v463
    %v1017 = vpop.f32.mrb[0].mxu0
    %v1018 = vadd.f32 %v61, %v1017
    %v1019 = vpop.f32.mrb[0].mxu0
    %v1020 = vpop.f32.mrb[0].mxu0
    %v1021 = vpop.f32.mrb[0].mxu0
    %1022 = vdwg.mxu0
    %1023 = vmatprep.subr.bf16.mxu0 0
    %1024 = vmatpush1.bf16.msra.mxu0 %v871
    %1025 = vmatprep.subr.bf16.mxu0 0
    %1026 = vmatpush1.bf16.msra.mxu0 %v872
    %1027 = vmatprep.subr.bf16.mxu0 0
    %1028 = vmatpush1.bf16.msra.mxu0 %v873
    %1029 = vmatprep.subr.bf16.mxu0 0
    %1030 = vmatpush1.bf16.msra.mxu0 %v874
    %1031 = vmatprep.subr.bf16.mxu0 0
    %1032 = vmatpush1.bf16.msra.mxu0 %v875
    %1033 = vmatprep.subr.bf16.mxu0 0
    %1034 = vmatpush1.bf16.msra.mxu0 %v876
    %1035 = vmatprep.subr.bf16.mxu0 0
    %1036 = vmatpush1.bf16.msra.mxu0 %v877
    %1037 = vmatprep.subr.bf16.mxu0 0
    %1038 = vmatpush1.bf16.msra.mxu0 %v878
    %1039 = vmatprep.subr.bf16.mxu0 0
    %1040 = vmatpush1.bf16.msra.mxu0 %v879
    %1041 = vmatprep.subr.bf16.mxu0 0
    %1042 = vmatpush1.bf16.msra.mxu0 %v880
    %1043 = vmatprep.subr.bf16.mxu0 0
    %1044 = vmatpush1.bf16.msra.mxu0 %v881
    %1045 = vmatprep.subr.bf16.mxu0 0
    %1046 = vmatpush1.bf16.msra.mxu0 %v882
    %1047 = vmatprep.subr.bf16.mxu0 0
    %1048 = vmatpush1.bf16.msra.mxu0 %v883
    %1049 = vmatprep.subr.bf16.mxu0 0
    %1050 = vmatpush1.bf16.msra.mxu0 %v884
    %1051 = vmatprep.subr.bf16.mxu0 0
    %1052 = vmatpush1.bf16.msra.mxu0 %v885
    %1053 = vmatprep.subr.bf16.mxu0 0
    %1054 = vmatpush1.bf16.msra.mxu0 %v886
    %1055 = vmatprep.mubr.bf16.mxu0 %v466
    %1056 = vmatmul.mubr.bf16.gmra.mrb[0].mxu0 %v465
    %v1057 = vpop.f32.mrb[0].mxu0
    %v1058 = vadd.f32 %v1018, %v1057
    %v1059 = vpop.f32.mrb[0].mxu0
    %v1060 = vpop.f32.mrb[0].mxu0
    %v1061 = vpop.f32.mrb[0].mxu0
    %1062 = vdwg.mxu0
    %1063 = vmatprep.subr.bf16.mxu0 0
    %1064 = vmatpush1.bf16.msra.mxu0 %v887
    %1065 = vmatprep.subr.bf16.mxu0 0
    %1066 = vmatpush1.bf16.msra.mxu0 %v888
    %1067 = vmatprep.subr.bf16.mxu0 0
    %1068 = vmatpush1.bf16.msra.mxu0 %v889
    %1069 = vmatprep.subr.bf16.mxu0 0
    %1070 = vmatpush1.bf16.msra.mxu0 %v890
    %1071 = vmatprep.subr.bf16.mxu0 0
    %1072 = vmatpush1.bf16.msra.mxu0 %v891
    %1073 = vmatprep.subr.bf16.mxu0 0
    %1074 = vmatpush1.bf16.msra.mxu0 %v892
    %1075 = vmatprep.subr.bf16.mxu0 0
    %1076 = vmatpush1.bf16.msra.mxu0 %v893
    %1077 = vmatprep.subr.bf16.mxu0 0
    %1078 = vmatpush1.bf16.msra.mxu0 %v894
    %1079 = vmatprep.subr.bf16.mxu0 0
    %1080 = vmatpush1.bf16.msra.mxu0 %v895
    %1081 = vmatprep.subr.bf16.mxu0 0
    %1082 = vmatpush1.bf16.msra.mxu0 %v896
    %1083 = vmatprep.subr.bf16.mxu0 0
    %1084 = vmatpush1.bf16.msra.mxu0 %v897
    %1085 = vmatprep.subr.bf16.mxu0 0
    %1086 = vmatpush1.bf16.msra.mxu0 %v898
    %1087 = vmatprep.subr.bf16.mxu0 0
    %1088 = vmatpush1.bf16.msra.mxu0 %v899
    %1089 = vmatprep.subr.bf16.mxu0 0
    %1090 = vmatpush1.bf16.msra.mxu0 %v900
    %1091 = vmatprep.subr.bf16.mxu0 0
    %1092 = vmatpush1.bf16.msra.mxu0 %v901
    %1093 = vmatprep.subr.bf16.mxu0 0
    %1094 = vmatpush1.bf16.msra.mxu0 %v902
    %1095 = vmatprep.mubr.bf16.mxu0 %v468
    %1096 = vmatmul.mubr.bf16.gmra.mrb[0].mxu0 %v467
    %v1097 = vpop.f32.mrb[0].mxu0
    %v1098 = vadd.f32 %v1058, %v1097
    %v1099 = vpop.f32.mrb[0].mxu0
    %v1100 = vpop.f32.mrb[0].mxu0
    %v1101 = vpop.f32.mrb[0].mxu0
    %1102 = vdwg.mxu0
    %1103 = vmatprep.subr.bf16.mxu0 0
    %1104 = vmatpush1.bf16.msra.mxu0 %v903
    %1105 = vmatprep.subr.bf16.mxu0 0
    %1106 = vmatpush1.bf16.msra.mxu0 %v904
    %1107 = vmatprep.subr.bf16.mxu0 0
    %1108 = vmatpush1.bf16.msra.mxu0 %v905
    %1109 = vmatprep.subr.bf16.mxu0 0
    %1110 = vmatpush1.bf16.msra.mxu0 %v906
    %1111 = vmatprep.subr.bf16.mxu0 0
    %1112 = vmatpush1.bf16.msra.mxu0 %v907
    %1113 = vmatprep.subr.bf16.mxu0 0
    %1114 = vmatpush1.bf16.msra.mxu0 %v908
    %1115 = vmatprep.subr.bf16.mxu0 0
    %1116 = vmatpush1.bf16.msra.mxu0 %v909
    %1117 = vmatprep.subr.bf16.mxu0 0
    %1118 = vmatpush1.bf16.msra.mxu0 %v910
    %1119 = vmatprep.subr.bf16.mxu0 0
    %1120 = vmatpush1.bf16.msra.mxu0 %v911
    %1121 = vmatprep.subr.bf16.mxu0 0
    %1122 = vmatpush1.bf16.msra.mxu0 %v912
    %1123 = vmatprep.subr.bf16.mxu0 0
    %1124 = vmatpush1.bf16.msra.mxu0 %v913
    %1125 = vmatprep.subr.bf16.mxu0 0
    %1126 = vmatpush1.bf16.msra.mxu0 %v914
    %1127 = vmatprep.subr.bf16.mxu0 0
    %1128 = vmatpush1.bf16.msra.mxu0 %v915
    %1129 = vmatprep.subr.bf16.mxu0 0
    %1130 = vmatpush1.bf16.msra.mxu0 %v916
    %1131 = vmatprep.subr.bf16.mxu0 0
    %1132 = vmatpush1.bf16.msra.mxu0 %v917
    %1133 = vmatprep.subr.bf16.mxu0 0
    %1134 = vmatpush1.bf16.msra.mxu0 %v918
    %1135 = vmatprep.mubr.bf16.mxu0 %v470
    %1136 = vmatmul.mubr.bf16.gmra.mrb[0].mxu0 %v469
    %v1137 = vpop.f32.mrb[0].mxu0
    %v1138 = vadd.f32 %v1098, %v1137
    %v1139 = vpop.f32.mrb[0].mxu0
    %v1140 = vpop.f32.mrb[0].mxu0
    %v1141 = vpop.f32.mrb[0].mxu0
    %1142 = vdwg.mxu0
    %v1143 = vtanh.pop %v1138
    %v1144 = vmul.f32 %v1143, 2.0
    %v1145 = vmax.f32 %v1138, 0.0
    %v1146 = vand.u32 2147483647, %v1138
    %v1147 = vsub.f32 0.0, %v1146
    %v1148 = vmul.f32 %v1147, 1.442695
    %v1149 = vpow.pop %v1148
    %v1150 = vadd.f32 %v1149, 1.0
    %v1151 = vlog2.pop %v1150
    %v1152 = vmul.f32 %v1151, 0.6931472
    %v1153 = vmul.f32 -0.5, %v1149
    %v1154 = vadd.f32 %v1153, 1.0
    %v1155 = vmul.f32 %v1154, %v1149
    %v1156 = vand.u32 2147483647, %v1149
    %vm1157 = vcmp.lt.f32.partialorder %v1156, 0.0004427343
    %v1158 = vsel %vm1157, %v1155, %v1152
    %v1159 = vadd.f32 %v1145, %v1158
    %v1160 = vadd.f32 %v1159, 0.001
    %v1161 = vlaneseq
    %v1162 = vand.u32 %v1161, 127
    %vm1163 = vcmp.lt.s32.totalorder %v1162, 8
    %v1164 = vsel %vm1163, %v1144, %v1160
    %1165 = vst [vmem:[#allocation8] sm:$0x1] %v1164
    // Predicated region
    $region30: #{tpu_custom_call.1} parent=1 // pred_check
      _
    $region31: #{tpu_custom_call.1} parent=1 // pred_check_branch
      %1167 = sbr.rel (0) target = $region33
    $region32: #{tpu_custom_call.1} parent=1 // pred_region
      %s1169 = ssub.s32 16, 16
      %1170 = vsyncadd [#allocation4], %s1169
      %s1172 = sshll.u32 [#allocation8], 4
      %s1173 = int_to_ptr.vmem [resolvable:$true] %s1172
      %1175 = dma.vmem_to_hbm [thread:$0]  %s1173, 16, %s4, [#allocation4]
    $region33: #{tpu_custom_call.1} parent=1 // pred_fallthru
      _
    // Predicated region
    $region34: #{tpu_custom_call.1} parent=1 // pred_check
      _
    $region35: #{tpu_custom_call.1} parent=1 // pred_check_branch
      %1177 = sbr.rel (0) target = $region37
    $region36: #{tpu_custom_call.1} parent=1 // pred_region
      %1178 = dma.done [#allocation4], 16
    $region37: #{tpu_custom_call.1} parent=1 // pred_fallthru
      _
    %1179 = vsyncpa [#allocation3], 1
    %1180 = vsyncpa [#allocation6], 1
    %1181 = vsyncpa [#allocation4], 1

</llo_original>
